<compile_context>
chip_gen: v6e
topology: v6e:2x2x1
jax: 0.10.0
libtpu: 0.0.40
codegen_flags: <defaults>
</compile_context>

<pallas_src>
import functools

import jax
import jax.numpy as jnp
from jax import lax
from jax.experimental import pallas as pl
from jax.experimental.pallas import tpu as pltpu


# Double-buffered input blocks (both pipeline buffers together) target this much
# VMEM; total scoped VMEM for the kernel is raised to _VMEM_LIMIT_BYTES, which is
# safe on v5e/v6e (128 MiB physical) and v7x (64 MiB physical).
_INPUT_VMEM_BUDGET = 16 * 1024 * 1024
_VMEM_LIMIT_BYTES = 32 * 1024 * 1024


def _round_up(x, m):
    return ((x + m - 1) // m) * m


def _as_small_int(p_static):
    """Return int(p) if p_static is a trace-time integral constant in [1, 16]."""
    if p_static is None:
        return None
    if float(p_static) == int(p_static) and 1 <= int(p_static) <= 16:
        return int(p_static)
    return None


def _int_pow(x, n):
    """x ** n for a static small positive integer n via repeated squaring (VPU only)."""
    result = None
    base = x
    while True:
        if n & 1:
            result = base if result is None else result * base
        n >>= 1
        if n == 0:
            break
        base = base * base
    return result


def _pick_tiles(rows, hw, itemsize, input_budget_bytes):
    """Choose (tile_rows, tile_hw) so two pipeline buffers of the input fit the budget.

    dtype-aware: bf16 inputs get twice the elements per block of f32 (halved HBM
    traffic per step and fewer per-step overheads) — pass bf16 activations straight
    through rather than upcasting in the wrapper.
    """
    padded_hw = _round_up(hw, 128)                       # lane padding occupies VMEM
    block_elems = max(input_budget_bytes // (2 * itemsize), 8 * 128)

    if 8 * padded_hw <= block_elems:
        # Whole spatial extent fits with >= 8 rows: single reduction step per row.
        tile_hw = hw
        max_tile_rows = block_elems // padded_hw
    else:
        # Very large H*W: split the spatial axis over a second ("arbitrary") grid
        # axis and accumulate partial sums in VMEM scratch so blocks stay bounded.
        max_tile_rows = min(64, max(8, (block_elems // 128) // 8 * 8))
        tile_hw = max(128, (block_elems // max_tile_rows) // 128 * 128)

    tile_rows = max(8, (max_tile_rows // 8) * 8)
    if rows >= 16:
        # Keep >= 2 steps on the parallel axis so both v7x TensorCores get work.
        tile_rows = min(tile_rows, _round_up((rows + 1) // 2, 8))
    if tile_rows >= rows:
        tile_rows = rows          # block dim == full array dim: always legal
    return tile_rows, tile_hw


def gem_kernel(p_ref, x_ref, o_ref, acc_ref, *, eps, inv_hw, hw, tile_hw, p_static):
    """GeM-pool one (tile_rows, tile_hw) tile, accumulating spatial partial sums.

    Grid: (row_tiles, hw_tiles); hw_tiles is the last ("arbitrary") axis.
    p_ref   : SMEM (1,) f32            learnable norm power (unused if p_static)
    x_ref   : VMEM (tile_rows, tile_hw) input tile
    o_ref   : VMEM (tile_rows, 1)       output, written on the last hw step
    acc_ref : VMEM (tile_rows, 1) f32   running sum of x**p over the spatial axis
    """
    j = pl.program_id(1)

    @pl.when(j == 0)
    def _init():
        acc_ref[...] = jnp.zeros_like(acc_ref)

    x = jnp.maximum(x_ref[...].astype(jnp.float32), eps)      # clamp(min=eps)

    n = _as_small_int(p_static)
    if n is not None:
        xp = _int_pow(x, n)                    # static small-int p: pure VPU, no log/exp
    elif p_static is not None:
        xp = jnp.exp(p_static * jnp.log(x))    # static non-integer p (constant folded)
    else:
        xp = jnp.exp(p_ref[0] * jnp.log(x))    # learnable p: EUP log + exp

    if hw % tile_hw != 0:
        # Ragged last spatial tile: zero out-of-range lanes before reducing.
        col = lax.broadcasted_iota(jnp.int32, xp.shape, 1) + j * tile_hw
        xp = jnp.where(col < hw, xp, 0.0)

    acc_ref[...] += jnp.sum(xp, axis=-1, keepdims=True)

    @pl.when(j == pl.num_programs(1) - 1)
    def _finalize():
        inv_p = (1.0 / p_static) if p_static is not None else (1.0 / p_ref[0])
        # mean over H*W == avg_pool2d over the full window; sum * (1/HW) avoids a divide.
        m = acc_ref[...] * inv_hw
        # Note: if an entire row clamps to eps and p is large, m can underflow to 0 and
        # the output becomes 0 instead of ~eps; jnp.power / torch.pow behave the same.
        o_ref[...] = jnp.exp(jnp.log(m) * inv_p).astype(o_ref.dtype)


def gem_pool(x, p, eps=1e-6, *, input_vmem_budget_bytes=_INPUT_VMEM_BUDGET):
    """GeM pooling.

    x : (B, C, H, W)
    p : (1,) float32 array (learnable, traced) OR a Python float/int
        (trace-time constant -> VPU fast path, no per-element transcendentals).
    Returns (B, C, 1, 1) in x.dtype.
    """
    B, C, H, W = x.shape
    rows, hw = B * C, H * W
    x2 = x.reshape(rows, hw)                  # spatial reduction along the lane axis

    if isinstance(p, (int, float)):
        p_static = float(p)
        p_arr = jnp.full((1,), p_static, dtype=jnp.float32)
    else:
        p_static = None
        p_arr = jnp.asarray(p, dtype=jnp.float32).reshape(1)

    itemsize = jnp.dtype(x.dtype).itemsize
    tile_rows, tile_hw = _pick_tiles(rows, hw, itemsize, input_vmem_budget_bytes)
    grid = (pl.cdiv(rows, tile_rows), pl.cdiv(hw, tile_hw))

    if _as_small_int(p_static) is not None:
        flops = 5 * rows * hw                       # clamp + repeated muls + mask + reduce
        transcendentals = 2 * rows                  # only the final log/exp root per row
    else:
        flops = 3 * rows * hw
        transcendentals = 2 * rows * hw + 2 * rows  # per-element log + exp

    out = pl.pallas_call(
        functools.partial(gem_kernel, eps=eps, inv_hw=1.0 / hw, hw=hw,
                          tile_hw=tile_hw, p_static=p_static),
        out_shape=jax.ShapeDtypeStruct((rows, 1), x.dtype),
        grid=grid,
        in_specs=[
            pl.BlockSpec(memory_space=pltpu.SMEM),                     # p (scalar param)
            pl.BlockSpec((tile_rows, tile_hw), lambda i, j: (i, j)),   # x tile
        ],
        out_specs=pl.BlockSpec((tile_rows, 1), lambda i, j: (i, 0)),   # resident over j
        scratch_shapes=[pltpu.VMEM((tile_rows, 1), jnp.float32)],      # spatial-sum acc
        compiler_params=pltpu.CompilerParams(
            dimension_semantics=("parallel", "arbitrary"),
            vmem_limit_bytes=_VMEM_LIMIT_BYTES,
        ),
        cost_estimate=pl.CostEstimate(
            flops=flops,
            transcendentals=transcendentals,
            bytes_accessed=rows * hw * itemsize + rows * itemsize + 4,
        ),
    )(p_arr, x2)

    return out.reshape(B, C, 1, 1)


def gem_reference(x, p, eps=1e-6):
    """Pure-JAX reference matching the PyTorch forward."""
    p0 = jnp.asarray(p, dtype=jnp.float32).reshape(-1)[0]
    xp = jnp.power(jnp.maximum(x.astype(jnp.float32), eps), p0)
    pooled = jnp.mean(xp, axis=(-2, -1), keepdims=True)
    return jnp.power(pooled, 1.0 / p0).astype(x.dtype)


if __name__ == "__main__":
    eps = 1e-6
    # Deterministic parameter init, matching nn.Parameter(torch.ones(1) * p), p=3
    p_param = jnp.ones((1,), dtype=jnp.float32) * 3.0

    key = jax.random.PRNGKey(0)
    k0, k1, k2 = jax.random.split(key, 3)

    # Primary case: B=2, C=4, 16x16 spatial, learnable (traced) p.
    x = jax.random.uniform(k0, (2, 4, 16, 16), dtype=jnp.float32)
    out = jax.block_until_ready(gem_pool(x, p_param, eps=eps))
    ref = gem_reference(x, p_param, eps=eps)
    assert out.shape == (2, 4, 1, 1), out.shape
    assert jnp.allclose(out, ref, rtol=1e-4, atol=1e-5), (out, ref)

    # Static-p fast path (p=3 constant -> x*x*x on the VPU, no per-element log/exp).
    out_s = jax.block_until_ready(gem_pool(x, 3.0, eps=eps))
    assert jnp.allclose(out_s, ref, rtol=1e-4, atol=1e-5), (out_s, ref)

    # Ragged row tiling (B*C = 21 not a multiple of tile_rows) -> no host-side pad.
    x2 = jax.random.uniform(k1, (3, 7, 8, 8), dtype=jnp.float32)
    out2 = jax.block_until_ready(gem_pool(x2, p_param, eps=eps))
    assert jnp.allclose(out2, gem_reference(x2, p_param, eps=eps), rtol=1e-4, atol=1e-5)

    # Spatial-split path: a tiny VMEM budget forces the hw grid axis + accumulator + mask.
    x3 = jax.random.uniform(k2, (2, 5, 16, 25), dtype=jnp.float32)
    out3 = jax.block_until_ready(
        gem_pool(x3, p_param, eps=eps, input_vmem_budget_bytes=16 * 1024))
    assert jnp.allclose(out3, gem_reference(x3, p_param, eps=eps), rtol=1e-4, atol=1e-5)

    print("KERNEL_OK")
</pallas_src>

<mosaic_0001>
module attributes {stable_mosaic.version = 11 : i64} {
  func.func @gem_kernel(%arg0: i32, %arg1: i32, %arg2: memref<1xf32, #tpu.memory_space<smem>>, %arg3: memref<8x256xf32, #tpu.memory_space<vmem>>, %arg4: memref<8x1xf32, #tpu.memory_space<vmem>>, %arg5: memref<8x1xf32, #tpu.memory_space<vmem>>) attributes {dimension_semantics = [#tpu.dimension_semantics<parallel>, #tpu.dimension_semantics<arbitrary>], iteration_bounds = array<i64: 1, 1>, scalar_prefetch = 0 : i64, scratch_operands = 1 : i64, tpu.core_type = #tpu.core_type<tc>, window_params = [{transform_indices = @transform_0, window_bounds = array<i64: 1>}, {transform_indices = @transform_1, window_bounds = array<i64: 8, 256>}, {transform_indices = @transform_2, window_bounds = array<i64: 8, 1>}]} {
    %c0_i32 = arith.constant 0 : i32
    %0 = arith.cmpi eq, %arg1, %c0_i32 : i32
    %1 = arith.extui %0 : i1 to i32
    %c0_i32_0 = arith.constant 0 : i32
    %2 = arith.cmpi ne, %1, %c0_i32_0 : i32
    scf.if %2 {
      %cst_10 = arith.constant 0.000000e+00 : f32
      %19 = vector.broadcast %cst_10 : f32 to vector<8x1xf32>
      %c0_11 = arith.constant 0 : index
      %c0_12 = arith.constant 0 : index
      %20 = vector.load %arg5[%c0_11, %c0_12] : memref<8x1xf32, #tpu.memory_space<vmem>>, vector<8x1xf32>
      tpu.vector_store %arg5[%c0_11, %c0_12], %19 {strides = array<i32>} : memref<8x1xf32, #tpu.memory_space<vmem>>, vector<8x1xf32>,
    } else {
    }
    %c0 = arith.constant 0 : index
    %c0_1 = arith.constant 0 : index
    %3 = vector.load %arg3[%c0, %c0_1] : memref<8x256xf32, #tpu.memory_space<vmem>>, vector<8x256xf32>
    %cst = arith.constant 9.99999997E-7 : f32
    %4 = vector.broadcast %cst : f32 to vector<8x256xf32>
    %5 = arith.maximumf %3, %4 : vector<8x256xf32>
    %c0_2 = arith.constant 0 : index
    %6 = memref.load %arg2[%c0_2] : memref<1xf32, #tpu.memory_space<smem>>
    %7 = math.log %5 : vector<8x256xf32>
    %8 = vector.broadcast %6 : f32 to vector<8x256xf32>
    %9 = arith.mulf %8, %7 : vector<8x256xf32>
    %10 = math.exp %9 : vector<8x256xf32>
    %c0_3 = arith.constant 0 : index
    %c0_4 = arith.constant 0 : index
    %11 = vector.load %arg5[%c0_3, %c0_4] : memref<8x1xf32, #tpu.memory_space<vmem>>, vector<8x1xf32>
    %cst_5 = arith.constant dense<0.000000e+00> : vector<8xf32>
    %12 = vector.multi_reduction <add>, %10, %cst_5 [1] : vector<8x256xf32> to vector<8xf32>
    %13 = vector.shape_cast %12 : vector<8xf32> to vector<8x1xf32>
    %14 = arith.addf %11, %13 : vector<8x1xf32>
    %c0_6 = arith.constant 0 : index
    %c0_7 = arith.constant 0 : index
    %15 = vector.load %arg5[%c0_6, %c0_7] : memref<8x1xf32, #tpu.memory_space<vmem>>, vector<8x1xf32>
    tpu.vector_store %arg5[%c0_6, %c0_7], %14 {strides = array<i32>} : memref<8x1xf32, #tpu.memory_space<vmem>>, vector<8x1xf32>,
    %c0_i32_8 = arith.constant 0 : i32
    %16 = arith.cmpi eq, %arg1, %c0_i32_8 : i32
    %17 = arith.extui %16 : i1 to i32
    %c0_i32_9 = arith.constant 0 : i32
    %18 = arith.cmpi ne, %17, %c0_i32_9 : i32
    scf.if %18 {
      %c0_10 = arith.constant 0 : index
      %19 = memref.load %arg2[%c0_10] : memref<1xf32, #tpu.memory_space<smem>>
      %cst_11 = arith.constant 1.000000e+00 : f32
      %20 = arith.divf %cst_11, %19 : f32
      %c0_12 = arith.constant 0 : index
      %c0_13 = arith.constant 0 : index
      %21 = vector.load %arg5[%c0_12, %c0_13] : memref<8x1xf32, #tpu.memory_space<vmem>>, vector<8x1xf32>
      %cst_14 = arith.constant 3.906250e-03 : f32
      %22 = vector.broadcast %cst_14 : f32 to vector<8x1xf32>
      %23 = arith.mulf %21, %22 : vector<8x1xf32>
      %24 = math.log %23 : vector<8x1xf32>
      %25 = vector.broadcast %20 : f32 to vector<8x1xf32>
      %26 = arith.mulf %24, %25 : vector<8x1xf32>
      %27 = math.exp %26 : vector<8x1xf32>
      %c0_15 = arith.constant 0 : index
      %c0_16 = arith.constant 0 : index
      %28 = vector.load %arg4[%c0_15, %c0_16] : memref<8x1xf32, #tpu.memory_space<vmem>>, vector<8x1xf32>
      tpu.vector_store %arg4[%c0_15, %c0_16], %27 {strides = array<i32>} : memref<8x1xf32, #tpu.memory_space<vmem>>, vector<8x1xf32>,
    } else {
    }
    return
  }
  func.func @transform_0(%arg0: i32, %arg1: i32) -> i32 {
    %c0_i32 = arith.constant 0 : i32
    %c0_i32_0 = arith.constant 0 : i32
    return %c0_i32 : i32
  }
  func.func @transform_1(%arg0: i32, %arg1: i32) -> (i32, i32) {
    %c0_i32 = arith.constant 0 : i32
    return %arg0, %arg1 : i32, i32
  }
  func.func @transform_2(%arg0: i32, %arg1: i32) -> (i32, i32) {
    %c0_i32 = arith.constant 0 : i32
    %c0_i32_0 = arith.constant 0 : i32
    return %arg0, %c0_i32 : i32, i32
  }
}

</mosaic_0001>

<llo_original>
// kernel: tpu_custom_call.1
$region0: #{tpu_custom_call.1}
  #allocation0 [shape = 'u32[]', space=smem, size = 0x4, offset = 0x4, fixed_abs, tag = 'smem constant byte address 0x4 - core index']
  #allocation1 [shape = 'u32[144,128]{1,0:T(1,128)}', space=vmem, size = 0x12000, scoped, tag = 'internal scratch']
  #allocation2 [shape = 'f32[8,1]{1,0:T(8,128)}', space=vmem, size = 0x1000, scoped, tag = 'scratch operand']
  #allocation3 [shape = 'f32[1]{0:T(128)S(6)}', space=smem, size = 0x200, scoped, tag = 'scoped memory for tpu_custom_call.1']
  %s0 = inlined_call_operand.<no memory space> [shape: f32[1], index: 0, kind: input, shape index: {}]
  %s1 = inlined_call_operand.hbm [shape: f32[8,256], index: 1, kind: input, shape index: {}]
  %s2 = inlined_call_operand.vmem [shape: f32[8,1], index: 2, kind: output, shape index: {}]
  %s3 = sld [smem:[#allocation0]]
  $region30: #{tpu_custom_call.1} parent=0
    _
  %s5 = ssub.s32 1, %s3
  %s6 = scalar_select 0, %s5, %s3
  %7 = sst [smem:[#allocation3]] %s0
  $region1: #{tpu_custom_call.1} parent=0
    #allocation4 [shape = 'u8[8192]{0}', space=vmem, size = 0x2000, scoped, tag = 'input window, operand 1, single buffered']
    #allocation5 [shape = 's32[1]{0}', space=sflag, size = 0x4, scoped, tag = 'scoped memory for tpu_custom_call.1']
    %8 = vsyncpa [#allocation5], 0
    // Predicated region
    $region2: #{tpu_custom_call.1} parent=1 // pred_check
      _
    $region3: #{tpu_custom_call.1} parent=1 // pred_check_branch
      %10 = sbr.rel (0) target = $region5
    $region4: #{tpu_custom_call.1} parent=1 // pred_region
      _
    $region5: #{tpu_custom_call.1} parent=1 // pred_fallthru
      _
    // Predicated region
    $region6: #{tpu_custom_call.1} parent=1 // pred_check
      _
    $region7: #{tpu_custom_call.1} parent=1 // pred_check_branch
      %12 = sbr.rel (0) target = $region9
    $region8: #{tpu_custom_call.1} parent=1 // pred_region
      %s14 = ssub.s32 256, 256
      %15 = vsyncadd [#allocation5], %s14
      %s17 = sshll.u32 [#allocation4], 4
      %s18 = int_to_ptr.vmem [resolvable:$true] %s17
      %20 = dma.hbm_to_vmem [thread:$0]  %s1, 256, %s18, [#allocation5]
    $region9: #{tpu_custom_call.1} parent=1 // pred_fallthru
      _
    // Predicated region
    $region10: #{tpu_custom_call.1} parent=1 // pred_check
      _
    $region11: #{tpu_custom_call.1} parent=1 // pred_check_branch
      %22 = sbr.rel (0) target = $region13
    $region12: #{tpu_custom_call.1} parent=1 // pred_region
      %23 = dma.done [#allocation5], 256
    $region13: #{tpu_custom_call.1} parent=1 // pred_fallthru
      _
    %p24 = scmp.eq.s32.totalorder 0, 0
    // Predicated region
    $region14: #{tpu_custom_call.1} parent=1 // pred_check
      %p25 = pneg %p24
    $region15: #{tpu_custom_call.1} parent=1 // pred_check_branch
      %27 = sbr.rel (%p25) target = $region17
    $region16: #{tpu_custom_call.1} parent=1 // pred_region
      %vm28 = vcmask 7168
      %29 = vst.msk [vmem:[#allocation2] sm:$0xff] %vm28, 0.0
    $region17: #{tpu_custom_call.1} parent=1 // pred_fallthru
      _
    %v30 = vld [vmem:[#allocation4] sm:$0xff]
    %v31 = vld [vmem:[#allocation4 + $0x8] sm:$0xff]
    %v32 = vmax.f32 %v30, 1e-06
    %v33 = vmax.f32 %v31, 1e-06
    %s34 = sld [smem:[#allocation3]]
    %v35 = vlog2.pop %v32
    %v36 = vmul.f32 %v35, 0.6931472
    %v37 = vlog2.pop %v33
    %v38 = vmul.f32 %v37, 0.6931472
    %v39 = vstv %s34
    %v40 = vmul.f32 %v39, %v36
    %v41 = vmul.f32 %v39, %v38
    %v42 = vmul.f32 %v40, 1.442695
    %v43 = vpow.pop %v42
    %v44 = vmul.f32 %v41, 1.442695
    %v45 = vpow.pop %v44
    %v46 = vld [vmem:[#allocation2] sm:$0xff]
    %v47 = vadd.f32 %v43, %v45
    %48 = vadd.xlane.f32.xlu0 %v47
    %v49 = vpop.xlane.xlu0 %48
    %v50 = vadd.f32 %v46, %v49
    %vm51 = vcmask 7168
    %52 = vst.msk [vmem:[#allocation2] sm:$0xff] %vm51, %v50
    // Predicated region
    $region18: #{tpu_custom_call.1} parent=1 // pred_check
      %p53 = pneg %p24
    $region19: #{tpu_custom_call.1} parent=1 // pred_check_branch
      %55 = sbr.rel (%p53) target = $region21
    $region20: #{tpu_custom_call.1} parent=1 // pred_region
      %s56 = sld [smem:[#allocation3]]
      %v57 = vstv %s56
      %v58 = vrcp.pop %v57
      %s59 = vtos %v58
      %v60 = vld [vmem:[#allocation2] sm:$0xff]
      %v61 = vmul.f32 %v60, 0.00390625
      %v62 = vlog2.pop %v61
      %v63 = vmul.f32 %v62, 0.6931472
      %v64 = vstv %s59
      %v65 = vmul.f32 %v63, %v64
      %v66 = vmul.f32 %v65, 1.442695
      %v67 = vpow.pop %v66
      %68 = vst.msk [vmem:[%s2] sm:$0xff] %vm51, %v67
    $region21: #{tpu_custom_call.1} parent=1 // pred_fallthru
      _
    // Predicated region
    $region22: #{tpu_custom_call.1} parent=1 // pred_check
      _
    $region23: #{tpu_custom_call.1} parent=1 // pred_check_branch
      %70 = sbr.rel (0) target = $region25
    $region24: #{tpu_custom_call.1} parent=1 // pred_region
      _
    $region25: #{tpu_custom_call.1} parent=1 // pred_fallthru
      _
    // Predicated region
    $region26: #{tpu_custom_call.1} parent=1 // pred_check
      _
    $region27: #{tpu_custom_call.1} parent=1 // pred_check_branch
      %72 = sbr.rel (0) target = $region29
    $region28: #{tpu_custom_call.1} parent=1 // pred_region
      _
    $region29: #{tpu_custom_call.1} parent=1 // pred_fallthru
      _
    %73 = vsyncpa [#allocation5], 1

</llo_original>
